<compile_context>
chip_gen: v5e
topology: v5e:2x2
jax: 0.10.0
libtpu: 0.0.40
codegen_flags: <defaults>
</compile_context>

<pallas_src>
import jax
import jax.numpy as jnp
from jax import lax
from jax.experimental import pallas as pl
from jax.experimental.pallas import tpu as pltpu


_NT = 256       # chunk width (lanes), multiple of 128; matches v6e/v7x 256x256 MXU
_G_MAX = 1024   # max chunks per grid step -> >=1 MiB key block per step


def _ceil_div(a, b):
    return -(-a // b)


def _lovasz_kernel(gts_ref, tri_ref, ltri_ref, key_ref, gt_ref, out_ref,
                   carry_ref, acc_ref):
    b = pl.program_id(0)            # image index (parallel across cores)
    s = pl.program_id(1)            # chunk-group index (sequential scan axis)
    n_s = pl.num_programs(1)

    G, Nt = key_ref.shape           # (chunks per step, chunk width)

    @pl.when(s == 0)                # new image -> reset carry and accumulator
    def _():
        acc_ref[0] = 0.0
        carry_ref[0] = 0.0

    gt16 = gt_ref[...]              # (G, Nt) bf16, values in {0, 1}, sorted order
    key = key_ref[...]              # (G, Nt) f32, ascending logits*signs
    err = 1.0 - key                 # hinge errors (descending)

    # level 1: within-chunk inclusive cumsum on the MXU (bf16 ops, f32 acc -> exact)
    cum_in = jnp.dot(gt16, tri_ref[...], preferred_element_type=jnp.float32)

    # per-chunk positive totals = last element of the (monotone) inclusive cumsum
    totals = jnp.max(cum_in, axis=1, keepdims=True)             # (G, 1) f32, exact
    # level 2a: exclusive prefix of totals across the G chunks of this step.
    # totals <= Nt = 256, exact in bf16; strictly-lower-tri matmul, f32 acc.
    excl_step = jnp.dot(ltri_ref[...], totals.astype(jnp.bfloat16),
                        preferred_element_type=jnp.float32)     # (G, 1)

    # level 2b: carry from previous grid steps of the same image
    carry = carry_ref[0]
    excl = excl_step + carry        # (G, 1): #positives before each chunk
    cum_gt = cum_in + excl          # (G, Nt): global inclusive cumsum of gt_sorted

    n_pos = gts_ref[b]              # total #positives of this image (scalar, SMEM)

    # Global pixel indices in f32 (exact up to 2^24 ~ 16.7M pixels).
    # TODO(synk): for images > 16M pixels compute indices in int32 per tile.
    lane_i = lax.broadcasted_iota(jnp.int32, (G, Nt), 1)
    row = lax.broadcasted_iota(jnp.int32, (G, 1), 0).astype(jnp.float32)
    base = (s * (G * Nt)).astype(jnp.float32)                   # first pixel of step
    c_nt = base + row * float(Nt)                               # (G, 1) chunk start idx
    idx1 = c_nt + lane_i.astype(jnp.float32) + 1.0              # (G, Nt) global i + 1

    intersection = n_pos - cum_gt
    union = n_pos + idx1 - cum_gt   # >= 1 everywhere (incl. padded pixels)
    jaccard = 1.0 - intersection / union

    # grad[i] = jaccard[i] - jaccard[i-1]   (grad[0] = jaccard[0])
    # boundary = jaccard of the last pixel of the previous chunk, computed at (G,1).
    # c_nt == 0 (first chunk of the image) is defined as 0; the denominator is
    # guarded there so no 0/0 appears even when n_pos == 0 -- do not "simplify"
    # the where into arithmetic masking.
    den = n_pos + c_nt - excl
    den = jnp.where(c_nt == 0.0, 1.0, den)
    boundary = jnp.where(c_nt == 0.0, 0.0, 1.0 - (n_pos - excl) / den)   # (G, 1)

    jac_prev_lane = pltpu.roll(jaccard, shift=1, axis=1)        # jaccard[i-1] in-chunk
    prev_jac = jnp.where(lane_i == 0, boundary, jac_prev_lane)
    grad = jaccard - prev_jac

    # sum_i relu(err_sorted)*grad ; padded pixels contribute exactly 0 (err == 0).
    acc_ref[0] = acc_ref[0] + jnp.sum(jnp.maximum(err, 0.0) * grad)
    carry_ref[0] = carry + jnp.sum(totals)

    @pl.when(s == n_s - 1)          # write the per-image loss once
    def _():
        out_ref[...] = acc_ref[0] + jnp.zeros(out_ref.shape, out_ref.dtype)


def _lovasz_forward(inp, target, g_max=_G_MAX):
    """inp, target: (B, 1, H, W). Returns scalar f32 lovasz_hinge(per_image=True)."""
    B = inp.shape[0]
    logits = inp.reshape(B, -1).astype(jnp.float32)
    labels = target.reshape(B, -1).astype(jnp.float32)
    N = logits.shape[1]

    # errors = 1 - logits*signs descending  <=>  key = logits*signs ascending.
    # TODO(synk): sorting has no Pallas TPU primitive; done with lax.sort_key_val
    # in the glue (single co-sort, no argsort / take_along_axis gathers).
    key = logits * (2.0 * labels - 1.0)
    key_s, gt_s = lax.sort_key_val(key, labels, dimension=1)

    gts = jnp.sum(labels, axis=1)                     # (B,) positives per image

    # Chunking: C chunks of Nt pixels per image, G chunks per grid step (S steps).
    Nt = _NT
    C = _ceil_div(N, Nt)
    S = _ceil_div(C, g_max)
    G = _ceil_div(_ceil_div(C, S), 8) * 8             # sublane-aligned block
    C_pad = S * G
    pad = C_pad * Nt - N
    if pad:
        # padded pixels: error = 0 (relu -> 0 contribution), label = 0
        key_s = jnp.pad(key_s, ((0, 0), (0, pad)), constant_values=1.0)
        gt_s = jnp.pad(gt_s, ((0, 0), (0, pad)), constant_values=0.0)

    key3 = key_s.reshape(B, C_pad, Nt)
    gt3 = gt_s.astype(jnp.bfloat16).reshape(B, C_pad, Nt)   # bf16 stream (exact 0/1)

    # tri[l', l] = 1 if l' <= l  ->  row @ tri == inclusive cumsum along lanes.
    tri = jnp.triu(jnp.ones((Nt, Nt), jnp.bfloat16))
    # ltri[i, j] = 1 if j < i   ->  ltri @ totals == exclusive prefix over chunks.
    ltri = jnp.tril(jnp.ones((G, G), jnp.bfloat16), k=-1)

    out = pl.pallas_call(
        _lovasz_kernel,
        out_shape=jax.ShapeDtypeStruct((B, 8, 128), jnp.float32),
        grid_spec=pltpu.PrefetchScalarGridSpec(
            num_scalar_prefetch=0,
            grid=(B, S),
            in_specs=[
                pl.BlockSpec(memory_space=pltpu.MemorySpace.SMEM),      # gts (B,)
                pl.BlockSpec((Nt, Nt), lambda b, s: (0, 0)),            # tri, resident
                pl.BlockSpec((G, G), lambda b, s: (0, 0)),              # ltri, resident
                pl.BlockSpec((None, G, Nt), lambda b, s: (b, s, 0)),    # key chunks
                pl.BlockSpec((None, G, Nt), lambda b, s: (b, s, 0)),    # label chunks
            ],
            out_specs=pl.BlockSpec((None, 8, 128), lambda b, s: (b, 0, 0)),
            scratch_shapes=[
                pltpu.SMEM((1,), jnp.float32),    # cross-chunk cumsum carry
                pltpu.SMEM((1,), jnp.float32),    # per-image loss accumulator
            ],
        ),
        compiler_params=pltpu.CompilerParams(
            # batch axis independent -> shard across TensorCores (v7x megacore);
            # scan axis carries the SMEM accumulators -> sequential.
            dimension_semantics=("parallel", "arbitrary"),
            vmem_limit_bytes=32 * 1024 * 1024,
        ),
    )(gts, tri, ltri, key3, gt3)

    return jnp.mean(out[:, 0, 0])


lovasz_hinge_loss = jax.jit(_lovasz_forward, static_argnames=("g_max",))


def _lovasz_hinge_ref(inp, target):
    """Pure-JAX reference of the PyTorch lovasz_hinge(per_image=True)."""
    B = inp.shape[0]
    logits = inp.reshape(B, -1).astype(jnp.float32)
    labels = target.reshape(B, -1).astype(jnp.float32)

    def per_image(log, lab):
        signs = 2.0 * lab - 1.0
        errors = 1.0 - log * signs
        order = jnp.argsort(-errors)
        errors_sorted = errors[order]
        gt_sorted = lab[order]
        gts = gt_sorted.sum()
        intersection = gts - jnp.cumsum(gt_sorted)
        union = gts + jnp.cumsum(1.0 - gt_sorted)
        jaccard = 1.0 - intersection / union
        grad = jnp.concatenate([jaccard[:1], jaccard[1:] - jaccard[:-1]])
        return jnp.dot(jnp.maximum(errors_sorted, 0.0), grad)

    return jnp.mean(jax.vmap(per_image)(logits, labels))


if __name__ == "__main__":
    key = jax.random.PRNGKey(0)

    # (shape, g_max override) -- small shapes; the g_max=16 case forces the
    # multi-step carry path (S > 1) plus chunk padding.
    tests = [((2, 1, 16, 16), None),
             ((2, 1, 96, 96), 16),
             ((2, 1, 192, 192), None)]

    for shape, g_max in tests:
        k1, k2 = jax.random.split(jax.random.fold_in(key, shape[2]))
        x = jax.random.normal(k1, shape, dtype=jnp.float32)
        y = (jax.random.uniform(k2, shape) > 0.5).astype(jnp.float32)

        if g_max is None:
            loss = lovasz_hinge_loss(x, y)
        else:
            loss = lovasz_hinge_loss(x, y, g_max=g_max)
        loss = jax.block_until_ready(loss)
        ref = jax.block_until_ready(_lovasz_hinge_ref(x, y))

        assert jnp.isfinite(loss), (shape, loss)
        assert jnp.allclose(loss, ref, rtol=1e-4, atol=1e-4), (shape, loss, ref)

    print("KERNEL_OK")
</pallas_src>

<mosaic_0001>
module attributes {stable_mosaic.version = 11 : i64} {
  func.func @_lovasz_kernel(%arg0: i32, %arg1: i32, %arg2: memref<2xf32, #tpu.memory_space<smem>>, %arg3: memref<256x256xbf16, #tpu.memory_space<vmem>>, %arg4: memref<8x8xbf16, #tpu.memory_space<vmem>>, %arg5: memref<1x8x256xf32, #tpu.memory_space<vmem>>, %arg6: memref<1x8x256xbf16, #tpu.memory_space<vmem>>, %arg7: memref<1x8x128xf32, #tpu.memory_space<vmem>>, %arg8: memref<1xf32, #tpu.memory_space<smem>>, %arg9: memref<1xf32, #tpu.memory_space<smem>>) attributes {dimension_semantics = [#tpu.dimension_semantics<parallel>, #tpu.dimension_semantics<arbitrary>], iteration_bounds = array<i64: 2, 1>, scalar_prefetch = 0 : i64, scratch_operands = 2 : i64, tpu.core_type = #tpu.core_type<tc>, window_params = [{transform_indices = @transform_0, window_bounds = array<i64: 2>}, {pipeline_mode = #tpu.pipeline_mode<synchronous>, transform_indices = @transform_1, window_bounds = array<i64: 256, 256>}, {pipeline_mode = #tpu.pipeline_mode<synchronous>, transform_indices = @transform_2, window_bounds = array<i64: 8, 8>}, {transform_indices = @transform_3, window_bounds = array<i64: 1, 8, 256>}, {transform_indices = @transform_4, window_bounds = array<i64: 1, 8, 256>}, {transform_indices = @transform_5, window_bounds = array<i64: 1, 8, 128>}]} {
    %c0_i32 = arith.constant 0 : i32
    %0 = arith.cmpi eq, %arg1, %c0_i32 : i32
    %1 = arith.extui %0 : i1 to i32
    %c0_i32_0 = arith.constant 0 : i32
    %2 = arith.cmpi ne, %1, %c0_i32_0 : i32
    scf.if %2 {
      %cst_31 = arith.constant 0.000000e+00 : f32
      %c0_32 = arith.constant 0 : index
      %87 = memref.load %arg9[%c0_32] : memref<1xf32, #tpu.memory_space<smem>>
      memref.store %cst_31, %arg9[%c0_32] : memref<1xf32, #tpu.memory_space<smem>>
      %cst_33 = arith.constant 0.000000e+00 : f32
      %c0_34 = arith.constant 0 : index
      %88 = memref.load %arg8[%c0_34] : memref<1xf32, #tpu.memory_space<smem>>
      memref.store %cst_33, %arg8[%c0_34] : memref<1xf32, #tpu.memory_space<smem>>
    } else {
    }
    %c0 = arith.constant 0 : index
    %c0_1 = arith.constant 0 : index
    %c0_2 = arith.constant 0 : index
    %3 = vector.load %arg6[%c0, %c0_1, %c0_2] : memref<1x8x256xbf16, #tpu.memory_space<vmem>>, vector<1x8x256xbf16>
    %4 = vector.shape_cast %3 : vector<1x8x256xbf16> to vector<8x256xbf16>
    %c0_3 = arith.constant 0 : index
    %c0_4 = arith.constant 0 : index
    %c0_5 = arith.constant 0 : index
    %5 = vector.load %arg5[%c0_3, %c0_4, %c0_5] : memref<1x8x256xf32, #tpu.memory_space<vmem>>, vector<1x8x256xf32>
    %6 = vector.shape_cast %5 : vector<1x8x256xf32> to vector<8x256xf32>
    %cst = arith.constant 1.000000e+00 : f32
    %7 = vector.broadcast %cst : f32 to vector<8x256xf32>
    %8 = arith.subf %7, %6 : vector<8x256xf32>
    %c0_6 = arith.constant 0 : index
    %c0_7 = arith.constant 0 : index
    %9 = vector.load %arg3[%c0_6, %c0_7] : memref<256x256xbf16, #tpu.memory_space<vmem>>, vector<256x256xbf16>
    %cst_8 = arith.constant dense<0.000000e+00> : vector<8x256xf32>
    %10 = tpu.matmul %4, %9, %cst_8 {dimension_numbers = #tpu.dot_dimension_numbers<[1], [0], [0], [1], [0, 0, 1, 1], [], []>} : vector<8x256xbf16>, vector<256x256xbf16>, vector<8x256xf32> -> vector<8x256xf32>
    %cst_9 = arith.constant dense<0xFF800000> : vector<8xf32>
    %11 = vector.multi_reduction <maximumf>, %10, %cst_9 [1] : vector<8x256xf32> to vector<8xf32>
    %12 = vector.shape_cast %11 : vector<8xf32> to vector<8x1xf32>
    %c0_10 = arith.constant 0 : index
    %c0_11 = arith.constant 0 : index
    %13 = vector.load %arg4[%c0_10, %c0_11] : memref<8x8xbf16, #tpu.memory_space<vmem>>, vector<8x8xbf16>
    %14 = arith.truncf %12 : vector<8x1xf32> to vector<8x1xbf16>
    %cst_12 = arith.constant dense<0.000000e+00> : vector<8x1xf32>
    %15 = tpu.matmul %13, %14, %cst_12 {dimension_numbers = #tpu.dot_dimension_numbers<[1], [0], [0], [1], [0, 0, 1, 1], [], []>} : vector<8x8xbf16>, vector<8x1xbf16>, vector<8x1xf32> -> vector<8x1xf32>
    %c0_13 = arith.constant 0 : index
    %16 = memref.load %arg8[%c0_13] : memref<1xf32, #tpu.memory_space<smem>>
    %17 = vector.broadcast %16 : f32 to vector<8x1xf32>
    %18 = arith.addf %15, %17 : vector<8x1xf32>
    %19 = vector.broadcast %18 : vector<8x1xf32> to vector<8x256xf32>
    %20 = arith.addf %10, %19 : vector<8x256xf32>
    %21 = arith.index_cast %arg0 : i32 to index
    %22 = memref.load %arg2[%21] : memref<2xf32, #tpu.memory_space<smem>>
    %23 = tpu.iota {dimensions = array<i32: 1>} : vector<8x256xi32>
    %24 = tpu.iota {dimensions = array<i32: 0>} : vector<8x1xi32>
    %25 = arith.sitofp %24 : vector<8x1xi32> to vector<8x1xf32>
    %c2048_i32 = arith.constant 2048 : i32
    %26 = arith.muli %arg1, %c2048_i32 : i32
    %27 = arith.sitofp %26 : i32 to f32
    %cst_14 = arith.constant 2.560000e+02 : f32
    %28 = vector.broadcast %cst_14 : f32 to vector<8x1xf32>
    %29 = arith.mulf %25, %28 : vector<8x1xf32>
    %30 = vector.broadcast %27 : f32 to vector<8x1xf32>
    %31 = arith.addf %30, %29 : vector<8x1xf32>
    %32 = arith.sitofp %23 : vector<8x256xi32> to vector<8x256xf32>
    %33 = vector.broadcast %31 : vector<8x1xf32> to vector<8x256xf32>
    %34 = arith.addf %33, %32 : vector<8x256xf32>
    %cst_15 = arith.constant 1.000000e+00 : f32
    %35 = vector.broadcast %cst_15 : f32 to vector<8x256xf32>
    %36 = arith.addf %34, %35 : vector<8x256xf32>
    %37 = vector.broadcast %22 : f32 to vector<8x256xf32>
    %38 = arith.subf %37, %20 : vector<8x256xf32>
    %39 = vector.broadcast %22 : f32 to vector<8x256xf32>
    %40 = arith.addf %39, %36 : vector<8x256xf32>
    %41 = arith.subf %40, %20 : vector<8x256xf32>
    %42 = arith.divf %38, %41 : vector<8x256xf32>
    %cst_16 = arith.constant 1.000000e+00 : f32
    %43 = vector.broadcast %cst_16 : f32 to vector<8x256xf32>
    %44 = arith.subf %43, %42 : vector<8x256xf32>
    %45 = vector.broadcast %22 : f32 to vector<8x1xf32>
    %46 = arith.addf %45, %31 : vector<8x1xf32>
    %47 = arith.subf %46, %18 : vector<8x1xf32>
    %cst_17 = arith.constant 0.000000e+00 : f32
    %48 = vector.broadcast %cst_17 : f32 to vector<8x1xf32>
    %49 = arith.cmpf oeq, %31, %48 : vector<8x1xf32>
    %cst_18 = arith.constant 1.000000e+00 : f32
    %50 = vector.broadcast %cst_18 : f32 to vector<8x1xf32>
    %51 = arith.select %49, %50, %47 : vector<8x1xi1>, vector<8x1xf32>
    %cst_19 = arith.constant 0.000000e+00 : f32
    %52 = vector.broadcast %cst_19 : f32 to vector<8x1xf32>
    %53 = arith.cmpf oeq, %31, %52 : vector<8x1xf32>
    %54 = vector.broadcast %22 : f32 to vector<8x1xf32>
    %55 = arith.subf %54, %18 : vector<8x1xf32>
    %56 = arith.divf %55, %51 : vector<8x1xf32>
    %cst_20 = arith.constant 1.000000e+00 : f32
    %57 = vector.broadcast %cst_20 : f32 to vector<8x1xf32>
    %58 = arith.subf %57, %56 : vector<8x1xf32>
    %cst_21 = arith.constant 0.000000e+00 : f32
    %59 = vector.broadcast %cst_21 : f32 to vector<8x1xf32>
    %60 = arith.select %53, %59, %58 : vector<8x1xi1>, vector<8x1xf32>
    %c1_i32 = arith.constant 1 : i32
    %61 = tpu.dynamic_rotate %44 by %c1_i32 dim 1 : vector<8x256xf32>, i32 -> vector<8x256xf32>
    %c0_i32_22 = arith.constant 0 : i32
    %62 = vector.broadcast %c0_i32_22 : i32 to vector<8x256xi32>
    %63 = arith.cmpi eq, %23, %62 : vector<8x256xi32>
    %64 = vector.shape_cast %60 : vector<8x1xf32> to vector<8x1xf32>
    %65 = vector.broadcast %64 : vector<8x1xf32> to vector<8x256xf32>
    %66 = arith.select %63, %65, %61 : vector<8x256xi1>, vector<8x256xf32>
    %67 = arith.subf %44, %66 : vector<8x256xf32>
    %c0_23 = arith.constant 0 : index
    %68 = memref.load %arg9[%c0_23] : memref<1xf32, #tpu.memory_space<smem>>
    %cst_24 = arith.constant 0.000000e+00 : f32
    %69 = vector.broadcast %cst_24 : f32 to vector<8x256xf32>
    %70 = arith.maximumf %8, %69 : vector<8x256xf32>
    %71 = arith.mulf %70, %67 : vector<8x256xf32>
    %72 = vector.shape_cast %71 : vector<8x256xf32> to vector<1x8x256xf32>
    %cst_25 = arith.constant dense<0.000000e+00> : vector<1xf32>
    %73 = vector.multi_reduction <add>, %72, %cst_25 [1, 2] : vector<1x8x256xf32> to vector<1xf32>
    %74 = vector.shape_cast %73 : vector<1xf32> to vector<1x1x1xf32>
    %75 = vector.extract %74[0, 0, 0] : f32 from vector<1x1x1xf32>
    %76 = arith.addf %68, %75 : f32
    %c0_26 = arith.constant 0 : index
    %77 = memref.load %arg9[%c0_26] : memref<1xf32, #tpu.memory_space<smem>>
    memref.store %76, %arg9[%c0_26] : memref<1xf32, #tpu.memory_space<smem>>
    %78 = vector.shape_cast %12 : vector<8x1xf32> to vector<1x8x1xf32>
    %cst_27 = arith.constant dense<0.000000e+00> : vector<1xf32>
    %79 = vector.multi_reduction <add>, %78, %cst_27 [1, 2] : vector<1x8x1xf32> to vector<1xf32>
    %80 = vector.shape_cast %79 : vector<1xf32> to vector<1x1x1xf32>
    %81 = vector.extract %80[0, 0, 0] : f32 from vector<1x1x1xf32>
    %82 = arith.addf %16, %81 : f32
    %c0_28 = arith.constant 0 : index
    %83 = memref.load %arg8[%c0_28] : memref<1xf32, #tpu.memory_space<smem>>
    memref.store %82, %arg8[%c0_28] : memref<1xf32, #tpu.memory_space<smem>>
    %c0_i32_29 = arith.constant 0 : i32
    %84 = arith.cmpi eq, %arg1, %c0_i32_29 : i32
    %85 = arith.extui %84 : i1 to i32
    %c0_i32_30 = arith.constant 0 : i32
    %86 = arith.cmpi ne, %85, %c0_i32_30 : i32
    scf.if %86 {
      %c0_31 = arith.constant 0 : index
      %87 = memref.load %arg9[%c0_31] : memref<1xf32, #tpu.memory_space<smem>>
      %cst_32 = arith.constant 0.000000e+00 : f32
      %88 = vector.broadcast %cst_32 : f32 to vector<8x128xf32>
      %89 = vector.broadcast %87 : f32 to vector<8x128xf32>
      %90 = arith.addf %89, %88 : vector<8x128xf32>
      %c0_33 = arith.constant 0 : index
      %c0_34 = arith.constant 0 : index
      %c0_35 = arith.constant 0 : index
      %91 = vector.load %arg7[%c0_33, %c0_34, %c0_35] : memref<1x8x128xf32, #tpu.memory_space<vmem>>, vector<1x8x128xf32>
      %92 = vector.shape_cast %91 : vector<1x8x128xf32> to vector<8x128xf32>
      %93 = vector.shape_cast %90 : vector<8x128xf32> to vector<1x8x128xf32>
      tpu.vector_store %arg7[%c0_33, %c0_34, %c0_35], %93 {strides = array<i32>} : memref<1x8x128xf32, #tpu.memory_space<vmem>>, vector<1x8x128xf32>,
    } else {
    }
    return
  }
  func.func @transform_0(%arg0: i32, %arg1: i32) -> i32 {
    %c0_i32 = arith.constant 0 : i32
    %c0_i32_0 = arith.constant 0 : i32
    return %c0_i32 : i32
  }
  func.func @transform_1(%arg0: i32, %arg1: i32) -> (i32, i32) {
    %c0_i32 = arith.constant 0 : i32
    %c0_i32_0 = arith.constant 0 : i32
    %c0_i32_1 = arith.constant 0 : i32
    return %c0_i32, %c0_i32_0 : i32, i32
  }
  func.func @transform_2(%arg0: i32, %arg1: i32) -> (i32, i32) {
    %c0_i32 = arith.constant 0 : i32
    %c0_i32_0 = arith.constant 0 : i32
    %c0_i32_1 = arith.constant 0 : i32
    return %c0_i32, %c0_i32_0 : i32, i32
  }
  func.func @transform_3(%arg0: i32, %arg1: i32) -> (i32, i32, i32) {
    %c0_i32 = arith.constant 0 : i32
    %c0_i32_0 = arith.constant 0 : i32
    return %arg0, %arg1, %c0_i32 : i32, i32, i32
  }
  func.func @transform_4(%arg0: i32, %arg1: i32) -> (i32, i32, i32) {
    %c0_i32 = arith.constant 0 : i32
    %c0_i32_0 = arith.constant 0 : i32
    return %arg0, %arg1, %c0_i32 : i32, i32, i32
  }
  func.func @transform_5(%arg0: i32, %arg1: i32) -> (i32, i32, i32) {
    %c0_i32 = arith.constant 0 : i32
    %c0_i32_0 = arith.constant 0 : i32
    %c0_i32_1 = arith.constant 0 : i32
    return %arg0, %c0_i32, %c0_i32_0 : i32, i32, i32
  }
}

</mosaic_0001>

<llo_original>
// kernel: _lovasz_forward.1
$region0: #{_lovasz_forward.1}
  #allocation0 [shape = 'u32[]', space=smem, size = 0x4, offset = 0x4, fixed_abs, tag = 'smem constant byte address 0x4 - core index']
  #allocation1 [shape = 'u32[72,128]{1,0:T(1,128)}', space=vmem, size = 0x9000, scoped, tag = 'internal scratch']
  #allocation2 [shape = 'f32[1]{0:T(128)}', space=smem, size = 0x200, scoped, tag = 'scratch operand']
  #allocation3 [shape = 'f32[1]{0:T(128)}', space=smem, size = 0x200, scoped, tag = 'scratch operand']
  %s0 = inlined_call_operand.vmem [shape: f32[2], index: 0, kind: input, shape index: {}]
  %s1 = inlined_call_operand.vmem [shape: bf16[256,256], index: 1, kind: input, shape index: {}]
  %s2 = inlined_call_operand.vmem [shape: bf16[8,8], index: 2, kind: input, shape index: {}]
  %s3 = inlined_call_operand.vmem [shape: f32[2,8,256], index: 3, kind: input, shape index: {}]
  %s4 = inlined_call_operand.vmem [shape: bf16[2,8,256], index: 4, kind: input, shape index: {}]
  %s5 = inlined_call_operand.vmem [shape: f32[2,8,128], index: 5, kind: output, shape index: {}]
  %s6 = sld [smem:[#allocation0]]
  $region65: #{_lovasz_forward.1} parent=0
    _
  %s8 = ssub.s32 1, %s6
  %s9 = scalar_select 0, %s8, %s6
  $region1: #{_lovasz_forward.1} parent=0
    #allocation4 [shape = 'u8[512]{0}', space=smem, size = 0x200, scoped, tag = 'input window, operand 0, single buffered']
    #allocation5 [shape = 's32[2]{0}', space=sflag, size = 0x8, scoped, tag = 'scoped memory for _lovasz_forward.1']
    %10 = vsyncpa [#allocation5], 0
    loop: start=0, step=1, limit=4
    $region2: #{_lovasz_forward.1} parent=1 // loop_pre_header
      _
    $region3: #{_lovasz_forward.1} parent=1 // loop_header
      %s12 = sphi 0, %s16
      %p13 = scmp.ge.s32.totalorder %s12, 4
      %s19 = sphi 0, %s31
      %s20 = sphi 0, %s27
      %s21 = sphi 0, %s19
      %s22 = sphi 0, %s20
      %s23 = sphi 0, %s21
      %s24 = sphi 0, %s22
      %s32 = sphi 0, %s32
      %s34 = sphi 0, %s32
      %s35 = sphi 0, %s34
      %s49 = sphi 0, %s35
      %s53 = sphi 0, %s53
      %s55 = sphi 0, %s53
      %s56 = sphi 0, %s55
      %s70 = sphi 0, %s56
      %s74 = sphi 0, %s74
      %s76 = sphi 0, %s74
      %s77 = sphi 0, %s76
      %s91 = sphi 0, %s77
      %s99 = sphi 0, %s101
      %s102 = sphi 0, %s99
      %s103 = sphi 0, %s102
      %s119 = sphi 0, %s103
      %s127 = sphi 0, %s129
      %s130 = sphi 0, %s127
      %s131 = sphi 0, %s130
      %s147 = sphi 0, %s131
      %s153 = sphi 0, %s155
      %s156 = sphi 0, %s153
      %s157 = sphi 0, %s156
      %s173 = sphi 0, %s157
    $region4: #{_lovasz_forward.1} parent=1 // loop_header_branch
      %15 = sbr.rel (%p13) target = $region8
    $region5: #{_lovasz_forward.1} parent=1 // loop_body
      %s17 = ssub.s32 %s12, 1
      %s18 = ssub.s32 %s12, 2
      %s25 = sadd.s32 1, %s20
      %p26 = scmp.ge.s32.totalorder %s25, 1
      %s27 = scalar_select %p26, 0, %s25
      %s28 = sadd.s32 1, %s19
      %s29 = scalar_select %p26, %s28, %s19
      %p30 = scmp.ge.s32.totalorder %s29, 2
      %s31 = scalar_select %p30, 0, %s29
      %s33 = sadd.s32 %s32, 1
      %p36 = scmp.eq.s32.totalorder %s12, 1
      %p37 = scmp.ne.s32.totalorder %s32, %s34
      %p38 = scmp.eq.s32.totalorder %s12, 0
      %p39 = por %p37, %p38
      %p40 = scmp.ne.s32.totalorder %s32, %s34
      %p41 = scmp.eq.s32.totalorder %s17, 1
      %p42 = por %p40, %p41
      %p43 = scmp.ne.s32.totalorder %s34, %s35
      %p44 = scmp.eq.s32.totalorder %s17, 0
      %p45 = por %p43, %p44
      %p46 = scmp.ne.s32.totalorder %s34, %s35
      %p47 = scmp.eq.s32.totalorder %s18, 1
      %p48 = por %p46, %p47
      %p50 = scmp.ne.s32.totalorder %s35, %s49
      %p51 = scmp.eq.s32.totalorder %s18, 0
      %p52 = por %p50, %p51
      %s54 = sadd.s32 %s53, 1
      %p57 = scmp.eq.s32.totalorder %s12, 1
      %p58 = scmp.ne.s32.totalorder %s53, %s55
      %p59 = scmp.eq.s32.totalorder %s12, 0
      %p60 = por %p58, %p59
      %p61 = scmp.ne.s32.totalorder %s53, %s55
      %p62 = scmp.eq.s32.totalorder %s17, 1
      %p63 = por %p61, %p62
      %p64 = scmp.ne.s32.totalorder %s55, %s56
      %p65 = scmp.eq.s32.totalorder %s17, 0
      %p66 = por %p64, %p65
      %p67 = scmp.ne.s32.totalorder %s55, %s56
      %p68 = scmp.eq.s32.totalorder %s18, 1
      %p69 = por %p67, %p68
      %p71 = scmp.ne.s32.totalorder %s56, %s70
      %p72 = scmp.eq.s32.totalorder %s18, 0
      %p73 = por %p71, %p72
      %s75 = sadd.s32 %s74, 1
      %p78 = scmp.eq.s32.totalorder %s12, 1
      %p79 = scmp.ne.s32.totalorder %s74, %s76
      %p80 = scmp.eq.s32.totalorder %s12, 0
      %p81 = por %p79, %p80
      %p82 = scmp.ne.s32.totalorder %s74, %s76
      %p83 = scmp.eq.s32.totalorder %s17, 1
      %p84 = por %p82, %p83
      %p85 = scmp.ne.s32.totalorder %s76, %s77
      %p86 = scmp.eq.s32.totalorder %s17, 0
      %p87 = por %p85, %p86
      %p88 = scmp.ne.s32.totalorder %s76, %s77
      %p89 = scmp.eq.s32.totalorder %s18, 1
      %p90 = por %p88, %p89
      %p92 = scmp.ne.s32.totalorder %s77, %s91
      %p93 = scmp.eq.s32.totalorder %s18, 0
      %p94 = por %p92, %p93
      %s95 = ssub.s32 %s19, %s31
      %s96 = ssub.s32 %s20, %s27
      %s97 = sor.u32 %s95, %s96
      %p98 = scmp.eq.s32.totalorder %s97, 0
      %s100 = sadd.s32 %s99, 1
      %s101 = scalar_select %p98, %s99, %s100
      %p104 = pneg %p98
      %p105 = scmp.eq.s32.totalorder %s12, 1
      %p106 = por %p104, %p105
      %p107 = scmp.ne.s32.totalorder %s99, %s102
      %p108 = scmp.eq.s32.totalorder %s12, 0
      %p109 = por %p107, %p108
      %p110 = scmp.ne.s32.totalorder %s99, %s102
      %p111 = scmp.eq.s32.totalorder %s17, 1
      %p112 = por %p110, %p111
      %p113 = scmp.ne.s32.totalorder %s102, %s103
      %p114 = scmp.eq.s32.totalorder %s17, 0
      %p115 = por %p113, %p114
      %p116 = scmp.ne.s32.totalorder %s102, %s103
      %p117 = scmp.eq.s32.totalorder %s18, 1
      %p118 = por %p116, %p117
      %p120 = scmp.ne.s32.totalorder %s103, %s119
      %p121 = scmp.eq.s32.totalorder %s18, 0
      %p122 = por %p120, %p121
      %s123 = ssub.s32 %s19, %s31
      %s124 = ssub.s32 %s20, %s27
      %s125 = sor.u32 %s123, %s124
      %p126 = scmp.eq.s32.totalorder %s125, 0
      %s128 = sadd.s32 %s127, 1
      %s129 = scalar_select %p126, %s127, %s128
      %p132 = pneg %p126
      %p133 = scmp.eq.s32.totalorder %s12, 1
      %p134 = por %p132, %p133
      %p135 = scmp.ne.s32.totalorder %s127, %s130
      %p136 = scmp.eq.s32.totalorder %s12, 0
      %p137 = por %p135, %p136
      %p138 = scmp.ne.s32.totalorder %s127, %s130
      %p139 = scmp.eq.s32.totalorder %s17, 1
      %p140 = por %p138, %p139
      %p141 = scmp.ne.s32.totalorder %s130, %s131
      %p142 = scmp.eq.s32.totalorder %s17, 0
      %p143 = por %p141, %p142
      %p144 = scmp.ne.s32.totalorder %s130, %s131
      %p145 = scmp.eq.s32.totalorder %s18, 1
      %p146 = por %p144, %p145
      %p148 = scmp.ne.s32.totalorder %s131, %s147
      %p149 = scmp.eq.s32.totalorder %s18, 0
      %p150 = por %p148, %p149
      %s151 = ssub.s32 %s19, %s31
      %p152 = scmp.eq.s32.totalorder %s151, 0
      %s154 = sadd.s32 %s153, 1
      %s155 = scalar_select %p152, %s153, %s154
      %p158 = pneg %p152
      %p159 = scmp.eq.s32.totalorder %s12, 1
      %p160 = por %p158, %p159
      %p161 = scmp.ne.s32.totalorder %s153, %s156
      %p162 = scmp.eq.s32.totalorder %s12, 0
      %p163 = por %p161, %p162
      %p164 = scmp.ne.s32.totalorder %s153, %s156
      %p165 = scmp.eq.s32.totalorder %s17, 1
      %p166 = por %p164, %p165
      %p167 = scmp.ne.s32.totalorder %s156, %s157
      %p168 = scmp.eq.s32.totalorder %s17, 0
      %p169 = por %p167, %p168
      %p170 = scmp.ne.s32.totalorder %s156, %s157
      %p171 = scmp.eq.s32.totalorder %s18, 1
      %p172 = por %p170, %p171
      %p174 = scmp.ne.s32.totalorder %s157, %s173
      %p175 = scmp.eq.s32.totalorder %s18, 0
      %p176 = por %p174, %p175
      %p177 = scmp.le.s32.totalorder 1, %s12
      %p178 = scmp.lt.s32.totalorder %s12, 3
      %p179 = pnand %p177, %p178
      %p180 = pneg %p179
      // Predicated region
      $region9: #{_lovasz_forward.1} parent=5 // pred_check
        _
      $region10: #{_lovasz_forward.1} parent=5 // pred_check_branch
        %182 = sbr.rel (%p179) target = $region12
      $region11: #{_lovasz_forward.1} parent=5 // pred_region
        %s183 = ssub.s32 %s12, 1
        // Predicated region
        $region13: #{_lovasz_forward.1} parent=11 // pred_check
          %p184 = pneg %p45
        $region14: #{_lovasz_forward.1} parent=11 // pred_check_branch
          %186 = sbr.rel (%p184) target = $region16
        $region15: #{_lovasz_forward.1} parent=11 // pred_region
          %188 = vsyncadd [#allocation5], 0
          %s190 = sshll.u32 %s0, 4
          %s191 = int_to_ptr.vmem [resolvable:$true] %s190
          %193 = dma.vmem_to_smem %s191, 16, [#allocation4], [#allocation5]
        $region16: #{_lovasz_forward.1} parent=11 // pred_fallthru
          _
        // Predicated region
        $region17: #{_lovasz_forward.1} parent=11 // pred_check
          %p194 = pneg %p66
        $region18: #{_lovasz_forward.1} parent=11 // pred_check_branch
          %196 = sbr.rel (%p194) target = $region20
        $region19: #{_lovasz_forward.1} parent=11 // pred_region
          _
        $region20: #{_lovasz_forward.1} parent=11 // pred_fallthru
          _
        // Predicated region
        $region21: #{_lovasz_forward.1} parent=11 // pred_check
          %p197 = pneg %p87
        $region22: #{_lovasz_forward.1} parent=11 // pred_check_branch
          %199 = sbr.rel (%p197) target = $region24
        $region23: #{_lovasz_forward.1} parent=11 // pred_region
          _
        $region24: #{_lovasz_forward.1} parent=11 // pred_fallthru
          _
      $region12: #{_lovasz_forward.1} parent=5 // pred_fallthru
        _
      %p200 = scmp.lt.s32.totalorder %s12, 2
      // Predicated region
      $region25: #{_lovasz_forward.1} parent=5 // pred_check
        %p201 = pneg %p200
      $region26: #{_lovasz_forward.1} parent=5 // pred_check_branch
        %203 = sbr.rel (%p201) target = $region28
      $region27: #{_lovasz_forward.1} parent=5 // pred_region
        // Predicated region
        $region29: #{_lovasz_forward.1} parent=27 // pred_check
          %p204 = pneg %p109
        $region30: #{_lovasz_forward.1} parent=27 // pred_check_branch
          %206 = sbr.rel (%p204) target = $region32
        $region31: #{_lovasz_forward.1} parent=27 // pred_region
          %p207 = scmp.lt.s32.totalorder %s19, 1
          %s208 = scalar_select %p207, %s19, 1
          %p209 = scmp.lt.s32.totalorder %s20, 0
          %s210 = scalar_select %p209, %s20, 0
          %s211 = smul.addr %s210, 2
          %s212 = smul.addr %s208, 2
          %s213 = sadd.s32 %s211, %s212
          %s214 = smul.addr %s213, 8
          %s215 = scalar_lea.vmem %s3, %s214
        $region32: #{_lovasz_forward.1} parent=27 // pred_fallthru
          _
        // Predicated region
        $region33: #{_lovasz_forward.1} parent=27 // pred_check
          %p216 = pneg %p137
        $region34: #{_lovasz_forward.1} parent=27 // pred_check_branch
          %218 = sbr.rel (%p216) target = $region36
        $region35: #{_lovasz_forward.1} parent=27 // pred_region
          %p219 = scmp.lt.s32.totalorder %s19, 1
          %s220 = scalar_select %p219, %s19, 1
          %p221 = scmp.lt.s32.totalorder %s20, 0
          %s222 = scalar_select %p221, %s20, 0
          %s223 = smul.addr %s222, 2
          %s224 = smul.addr %s220, 2
          %s225 = sadd.s32 %s223, %s224
          %s226 = smul.addr %s225, 4
          %s227 = scalar_lea.vmem %s4, %s226
        $region36: #{_lovasz_forward.1} parent=27 // pred_fallthru
          _
      $region28: #{_lovasz_forward.1} parent=5 // pred_fallthru
        _
      %p228 = scmp.le.s32.totalorder 1, %s12
      %p229 = scmp.lt.s32.totalorder %s12, 3
      %p230 = pnand %p228, %p229
      %p231 = pneg %p230
      // Predicated region
      $region37: #{_lovasz_forward.1} parent=5 // pred_check
        _
      $region38: #{_lovasz_forward.1} parent=5 // pred_check_branch
        %233 = sbr.rel (%p230) target = $region40
      $region39: #{_lovasz_forward.1} parent=5 // pred_region
        %s234 = ssub.s32 %s12, 1
        // Predicated region
        $region41: #{_lovasz_forward.1} parent=39 // pred_check
          %p235 = pneg %p45
        $region42: #{_lovasz_forward.1} parent=39 // pred_check_branch
          %237 = sbr.rel (%p235) target = $region44
        $region43: #{_lovasz_forward.1} parent=39 // pred_region
          %239 = dma.done [#allocation5], 16
        $region44: #{_lovasz_forward.1} parent=39 // pred_fallthru
          _
        %240 = sfence
        %p241 = pneg %p45
        %p242 = pneg %p42
        %p243 = pneg %p66
        %p244 = pneg %p63
        %p245 = pneg %p87
        %p246 = pneg %p84
        %p247 = scmp.lt.s32.totalorder %s21, 1
        %s248 = scalar_select %p247, %s21, 1
        %p249 = scmp.lt.s32.totalorder %s22, 0
        %s250 = scalar_select %p249, %s22, 0
        %s251 = smul.addr %s250, 2
        %s252 = smul.addr %s248, 2
        %s253 = sadd.s32 %s251, %s252
        %s254 = smul.addr %s253, 8
        %s255 = scalar_lea.vmem %s3, %s254
        %p256 = pneg %p115
        %p257 = pneg %p112
        %p258 = scmp.lt.s32.totalorder %s21, 1
        %s259 = scalar_select %p258, %s21, 1
        %p260 = scmp.lt.s32.totalorder %s22, 0
        %s261 = scalar_select %p260, %s22, 0
        %s262 = smul.addr %s261, 2
        %s263 = smul.addr %s259, 2
        %s264 = sadd.s32 %s262, %s263
        %s265 = smul.addr %s264, 4
        %s266 = scalar_lea.vmem %s4, %s265
        %p267 = pneg %p143
        %p268 = pneg %p140
        %p269 = pneg %p169
        %p270 = pneg %p166
        %p271 = scmp.lt.s32.totalorder %s21, 1
        %s272 = scalar_select %p271, %s21, 1
        %s273 = smul.addr %s272, 8
        %s274 = scalar_lea.vmem %s5, %s273
        %p275 = scmp.lt.s32.totalorder %s21, 1
        %s276 = scalar_select %p275, %s21, 1
        %p277 = scmp.lt.s32.totalorder %s22, 0
        %s278 = scalar_select %p277, %s22, 0
        %s279 = smul.addr %s278, 2
        %s280 = smul.addr %s276, 2
        %s281 = sadd.s32 %s279, %s280
        %s282 = smul.addr %s281, 8
        %s283 = scalar_lea.vmem %s3, %s282
        %p284 = scmp.lt.s32.totalorder %s21, 1
        %s285 = scalar_select %p284, %s21, 1
        %p286 = scmp.lt.s32.totalorder %s22, 0
        %s287 = scalar_select %p286, %s22, 0
        %s288 = smul.addr %s287, 2
        %s289 = smul.addr %s285, 2
        %s290 = sadd.s32 %s288, %s289
        %s291 = smul.addr %s290, 4
        %s292 = scalar_lea.vmem %s4, %s291
        %p293 = scmp.lt.s32.totalorder %s21, 1
        %s294 = scalar_select %p293, %s21, 1
        %s295 = smul.addr %s294, 8
        %s296 = scalar_lea.vmem %s5, %s295
        %p298 = scmp.eq.s32.totalorder %s22, 0
        // Predicated region
        $region45: #{_lovasz_forward.1} parent=39 // pred_check
          %p299 = pneg %p298
        $region46: #{_lovasz_forward.1} parent=39 // pred_check_branch
          %301 = sbr.rel (%p299) target = $region48
        $region47: #{_lovasz_forward.1} parent=39 // pred_region
          %s302 = scalar_lea.smem [#allocation3], 0
          %303 = sst [smem:[%s302]] 0.0
          %s304 = scalar_lea.smem [#allocation2], 0
          %305 = sst [smem:[%s304]] 0.0
        $region48: #{_lovasz_forward.1} parent=39 // pred_fallthru
          _
        %v306 = vld [vmem:[%s292] sm:$0xff]
        %v307 = vld [vmem:[%s283] sm:$0xff]
        %v308 = vld [vmem:[%s283 + $0x8] sm:$0xff]
        %v309 = vsub.f32 1.0, %v307
        %v310 = vsub.f32 1.0, %v308
        %v311 = vld [vmem:[%s1] sm:$0xff]
        %v312 = vld [vmem:[%s1 + $0x8] sm:$0xff]
        %v313 = vld [vmem:[%s1 + $0x10] sm:$0xff]
        %v314 = vld [vmem:[%s1 + $0x18] sm:$0xff]
        %v315 = vld [vmem:[%s1 + $0x20] sm:$0xff]
        %v316 = vld [vmem:[%s1 + $0x28] sm:$0xff]
        %v317 = vld [vmem:[%s1 + $0x30] sm:$0xff]
        %v318 = vld [vmem:[%s1 + $0x38] sm:$0xff]
        %v319 = vld [vmem:[%s1 + $0x40] sm:$0xff]
        %v320 = vld [vmem:[%s1 + $0x48] sm:$0xff]
        %v321 = vld [vmem:[%s1 + $0x50] sm:$0xff]
        %v322 = vld [vmem:[%s1 + $0x58] sm:$0xff]
        %v323 = vld [vmem:[%s1 + $0x60] sm:$0xff]
        %v324 = vld [vmem:[%s1 + $0x68] sm:$0xff]
        %v325 = vld [vmem:[%s1 + $0x70] sm:$0xff]
        %v326 = vld [vmem:[%s1 + $0x78] sm:$0xff]
        %v327 = vld [vmem:[%s1 + $0x80] sm:$0xff]
        %v328 = vld [vmem:[%s1 + $0x88] sm:$0xff]
        %v329 = vld [vmem:[%s1 + $0x90] sm:$0xff]
        %v330 = vld [vmem:[%s1 + $0x98] sm:$0xff]
        %v331 = vld [vmem:[%s1 + $0xa0] sm:$0xff]
        %v332 = vld [vmem:[%s1 + $0xa8] sm:$0xff]
        %v333 = vld [vmem:[%s1 + $0xb0] sm:$0xff]
        %v334 = vld [vmem:[%s1 + $0xb8] sm:$0xff]
        %v335 = vld [vmem:[%s1 + $0xc0] sm:$0xff]
        %v336 = vld [vmem:[%s1 + $0xc8] sm:$0xff]
        %v337 = vld [vmem:[%s1 + $0xd0] sm:$0xff]
        %v338 = vld [vmem:[%s1 + $0xd8] sm:$0xff]
        %v339 = vld [vmem:[%s1 + $0xe0] sm:$0xff]
        %v340 = vld [vmem:[%s1 + $0xe8] sm:$0xff]
        %v341 = vld [vmem:[%s1 + $0xf0] sm:$0xff]
        %v342 = vld [vmem:[%s1 + $0xf8] sm:$0xff]
        %v344 = vunpack.c.l.b16 %v306
        %v345 = vunpack.c.h.b16 %v306
        %v346 = vpack.c.b16 %v344, %v344
        %v347 = vpack.c.b16 %v345, %v345
        %v382 = vunpack.c.l.b16 %v311
        %v383 = vunpack.c.h.b16 %v311
        %v384 = vunpack.c.l.b16 %v312
        %v385 = vunpack.c.h.b16 %v312
        %v386 = vunpack.c.l.b16 %v313
        %v387 = vunpack.c.h.b16 %v313
        %v388 = vunpack.c.l.b16 %v314
        %v389 = vunpack.c.h.b16 %v314
        %v390 = vunpack.c.l.b16 %v315
        %v391 = vunpack.c.h.b16 %v315
        %v392 = vunpack.c.l.b16 %v316
        %v393 = vunpack.c.h.b16 %v316
        %v394 = vunpack.c.l.b16 %v317
        %v395 = vunpack.c.h.b16 %v317
        %v396 = vunpack.c.l.b16 %v318
        %v397 = vunpack.c.h.b16 %v318
        %v398 = vunpack.c.l.b16 %v319
        %v399 = vunpack.c.h.b16 %v319
        %v400 = vunpack.c.l.b16 %v320
        %v401 = vunpack.c.h.b16 %v320
        %v402 = vunpack.c.l.b16 %v321
        %v403 = vunpack.c.h.b16 %v321
        %v404 = vunpack.c.l.b16 %v322
        %v405 = vunpack.c.h.b16 %v322
        %v406 = vunpack.c.l.b16 %v323
        %v407 = vunpack.c.h.b16 %v323
        %v408 = vunpack.c.l.b16 %v324
        %v409 = vunpack.c.h.b16 %v324
        %v410 = vunpack.c.l.b16 %v325
        %v411 = vunpack.c.h.b16 %v325
        %v412 = vunpack.c.l.b16 %v326
        %v413 = vunpack.c.h.b16 %v326
        %v414 = vunpack.c.l.b16 %v327
        %v415 = vunpack.c.h.b16 %v327
        %v416 = vunpack.c.l.b16 %v328
        %v417 = vunpack.c.h.b16 %v328
        %v418 = vunpack.c.l.b16 %v329
        %v419 = vunpack.c.h.b16 %v329
        %v420 = vunpack.c.l.b16 %v330
        %v421 = vunpack.c.h.b16 %v330
        %v422 = vunpack.c.l.b16 %v331
        %v423 = vunpack.c.h.b16 %v331
        %v424 = vunpack.c.l.b16 %v332
        %v425 = vunpack.c.h.b16 %v332
        %v426 = vunpack.c.l.b16 %v333
        %v427 = vunpack.c.h.b16 %v333
        %v428 = vunpack.c.l.b16 %v334
        %v429 = vunpack.c.h.b16 %v334
        %v430 = vunpack.c.l.b16 %v335
        %v431 = vunpack.c.h.b16 %v335
        %v432 = vunpack.c.l.b16 %v336
        %v433 = vunpack.c.h.b16 %v336
        %v434 = vunpack.c.l.b16 %v337
        %v435 = vunpack.c.h.b16 %v337
        %v436 = vunpack.c.l.b16 %v338
        %v437 = vunpack.c.h.b16 %v338
        %v438 = vunpack.c.l.b16 %v339
        %v439 = vunpack.c.h.b16 %v339
        %v440 = vunpack.c.l.b16 %v340
        %v441 = vunpack.c.h.b16 %v340
        %v442 = vunpack.c.l.b16 %v341
        %v443 = vunpack.c.h.b16 %v341
        %v444 = vunpack.c.l.b16 %v342
        %v445 = vunpack.c.h.b16 %v342
        %v446 = vpack.c.b16 %v384, %v382
        %v447 = vpack.c.b16 %v385, %v383
        %v448 = vpack.c.b16 %v388, %v386
        %v449 = vpack.c.b16 %v389, %v387
        %v450 = vpack.c.b16 %v392, %v390
        %v451 = vpack.c.b16 %v393, %v391
        %v452 = vpack.c.b16 %v396, %v394
        %v453 = vpack.c.b16 %v397, %v395
        %v454 = vpack.c.b16 %v400, %v398
        %v455 = vpack.c.b16 %v401, %v399
        %v456 = vpack.c.b16 %v404, %v402
        %v457 = vpack.c.b16 %v405, %v403
        %v458 = vpack.c.b16 %v408, %v406
        %v459 = vpack.c.b16 %v409, %v407
        %v460 = vpack.c.b16 %v412, %v410
        %v461 = vpack.c.b16 %v413, %v411
        %v462 = vpack.c.b16 %v416, %v414
        %v463 = vpack.c.b16 %v417, %v415
        %v464 = vpack.c.b16 %v420, %v418
        %v465 = vpack.c.b16 %v421, %v419
        %v466 = vpack.c.b16 %v424, %v422
        %v467 = vpack.c.b16 %v425, %v423
        %v468 = vpack.c.b16 %v428, %v426
        %v469 = vpack.c.b16 %v429, %v427
        %v470 = vpack.c.b16 %v432, %v430
        %v471 = vpack.c.b16 %v433, %v431
        %v472 = vpack.c.b16 %v436, %v434
        %v473 = vpack.c.b16 %v437, %v435
        %v474 = vpack.c.b16 %v440, %v438
        %v475 = vpack.c.b16 %v441, %v439
        %v476 = vpack.c.b16 %v444, %v442
        %v477 = vpack.c.b16 %v445, %v443
        %510 = vmatpush.bf16.msra.mxu0 %v460
        %511 = vmatpush.bf16.msra.mxu0 %v458
        %512 = vmatpush.bf16.msra.mxu0 %v456
        %513 = vmatpush.bf16.msra.mxu0 %v454
        %514 = vmatpush.bf16.msra.mxu0 %v452
        %515 = vmatpush.bf16.msra.mxu0 %v450
        %516 = vmatpush.bf16.msra.mxu0 %v448
        %517 = vmatpush.bf16.msra.mxu0 %v446
        %518 = vmatmul.bf16.gmra.mxu0 %v346
        %v519 = vpop.f32.mrf.mxu0
        %v520 = vadd.f32 0.0, %v519
        %v521 = vpop.f32.mrf.mxu0
        %522 = vdwg.mxu0
        %523 = vmatpush.bf16.msra.mxu0 %v476
        %524 = vmatpush.bf16.msra.mxu0 %v474
        %525 = vmatpush.bf16.msra.mxu0 %v472
        %526 = vmatpush.bf16.msra.mxu0 %v470
        %527 = vmatpush.bf16.msra.mxu0 %v468
        %528 = vmatpush.bf16.msra.mxu0 %v466
        %529 = vmatpush.bf16.msra.mxu0 %v464
        %530 = vmatpush.bf16.msra.mxu0 %v462
        %531 = vmatmul.bf16.gmra.mxu0 %v347
        %v532 = vpop.f32.mrf.mxu0
        %v533 = vadd.f32 %v520, %v532
        %v534 = vpop.f32.mrf.mxu0
        %535 = vdwg.mxu0
        %536 = vmatpush.bf16.msra.mxu0 %v461
        %537 = vmatpush.bf16.msra.mxu0 %v459
        %538 = vmatpush.bf16.msra.mxu0 %v457
        %539 = vmatpush.bf16.msra.mxu0 %v455
        %540 = vmatpush.bf16.msra.mxu0 %v453
        %541 = vmatpush.bf16.msra.mxu0 %v451
        %542 = vmatpush.bf16.msra.mxu0 %v449
        %543 = vmatpush.bf16.msra.mxu0 %v447
        %544 = vmatmul.bf16.gmra.mxu0 %v346
        %v545 = vpop.f32.mrf.mxu0
        %v546 = vadd.f32 0.0, %v545
        %v547 = vpop.f32.mrf.mxu0
        %548 = vdwg.mxu0
        %549 = vmatpush.bf16.msra.mxu0 %v477
        %550 = vmatpush.bf16.msra.mxu0 %v475
        %551 = vmatpush.bf16.msra.mxu0 %v473
        %552 = vmatpush.bf16.msra.mxu0 %v471
        %553 = vmatpush.bf16.msra.mxu0 %v469
        %554 = vmatpush.bf16.msra.mxu0 %v467
        %555 = vmatpush.bf16.msra.mxu0 %v465
        %556 = vmatpush.bf16.msra.mxu0 %v463
        %557 = vmatmul.bf16.gmra.mxu0 %v347
        %v558 = vpop.f32.mrf.mxu0
        %v559 = vadd.f32 %v546, %v558
        %v560 = vpop.f32.mrf.mxu0
        %561 = vdwg.mxu0
        %v562 = vmax.f32 %v533, %v559
        %563 = vmax.xlane.f32.xlu0 %v562
        %v564 = vpop.xlane.xlu0 %563
        %v565 = vld [vmem:[%s2] sm:$0xf]
        %v566 = vpack.c.bf16 %v564, %v564
        %s567 = sld [smem:[#allocation2]]
        %v568 = vstv %s567
        %vm569 = vcmask 64512
        %v571 = vsel %vm569, %v565, 0
        %vm573 = vcmask 1043456
        %v575 = vsel %vm573, %v566, 0
        %577 = vmatpush.bf16.msra.mxu0 0
        %578 = vmatpush.bf16.msra.mxu0 0
        %579 = vmatpush.bf16.msra.mxu0 0
        %580 = vmatpush.bf16.msra.mxu0 0
        %581 = vmatpush.bf16.msra.mxu0 0
        %582 = vmatpush.bf16.msra.mxu0 0
        %583 = vmatpush.bf16.msra.mxu0 0
        %584 = vmatpush.bf16.msra.mxu0 %v575
        %585 = vmatmul.bf16.gmra.mxu0 %v571
        %v586 = vpop.f32.mrf.mxu0
        %v587 = vadd.f32 %v568, %v586
        %v588 = vpop.f32.mrf.mxu0
        %589 = vdwg.mxu0
        %591 = vset.pattern.permute.xlu0 0
        %592 = vperm.xlu0 %591, %v587
        %v593 = vpop.permute.xlu0 %592
        %v595 = vadd.f32 %v533, %v593
        %v596 = vadd.f32 %v559, %v593
        %s597 = sld [smem:[#allocation4 + %s21]]
        %v598 = vlaneseq
        %v599 = vand.u32 %v598, 127
        %v600 = vadd.s32 %v599, 128
        %v601 = vlaneseq
        %v602 = vshrl.u32 %v601, 7
        %v603 = vcvt.s32.f32 %v602
        %s604 = smul.u32 %s22, 2048
        %s605 = scvt.s32.f32 %s604
        %v606 = vmul.f32 %v603, 256.0
        %v607 = vstv %s605
        %v608 = vadd.f32 %v607, %v606
        %v609 = vcvt.s32.f32 %v599
        %v610 = vcvt.s32.f32 %v600
        %v611 = vadd.f32 %v608, %v609
        %v612 = vadd.f32 %v608, %v610
        %v613 = vadd.f32 %v611, 1.0
        %v614 = vadd.f32 %v612, 1.0
        %v615 = vstv %s597
        %v616 = vsub.f32 %v615, %v595
        %v617 = vsub.f32 %v615, %v596
        %v618 = vadd.f32 %v615, %v613
        %v619 = vadd.f32 %v615, %v614
        %v620 = vsub.f32 %v618, %v595
        %v621 = vsub.f32 %v619, %v596
        %v622 = vrcp.pop %v620
        %v623 = vmul.f32 %v620, %v622
        %v624 = vsub.f32 1.0, %v623
        %v625 = vmul.f32 %v622, %v624
        %v626 = vadd.f32 %v622, %v625
        %vm627 = vweird.f32 %v620
        %vm628 = vweird.f32 %v622
        %vm629 = vmor %vm627, %vm628
        %v630 = vsel %vm629, %v622, %v626
        %v631 = vand.u32 2147483647, %v620
        %vm632 = vcmp.eq.f32.partialorder %v631, 8.507059e+37
        %v633 = vand.u32 %v620, 2147483648
        %v634 = vor.u32 1.1754944e-38, %v633
        %v635 = vsel %vm632, %v634, %v630
        %v636 = vmul.f32 %v616, %v635
        %v637 = vrcp.pop %v621
        %v638 = vmul.f32 %v621, %v637
        %v639 = vsub.f32 1.0, %v638
        %v640 = vmul.f32 %v637, %v639
        %v641 = vadd.f32 %v637, %v640
        %vm642 = vweird.f32 %v621
        %vm643 = vweird.f32 %v637
        %vm644 = vmor %vm642, %vm643
        %v645 = vsel %vm644, %v637, %v641
        %v646 = vand.u32 2147483647, %v621
        %vm647 = vcmp.eq.f32.partialorder %v646, 8.507059e+37
        %v648 = vand.u32 %v621, 2147483648
        %v649 = vor.u32 1.1754944e-38, %v648
        %v650 = vsel %vm647, %v649, %v645
        %v651 = vmul.f32 %v617, %v650
        %v652 = vsub.f32 1.0, %v636
        %v653 = vsub.f32 1.0, %v651
        %v654 = vadd.f32 %v615, %v608
        %v655 = vsub.f32 %v654, %v587
        %vm656 = vcmp.eq.f32.partialorder %v608, 0.0
        %v657 = vsel %vm656, 1.0, %v655
        %v658 = vsub.f32 %v615, %v587
        %v659 = vrcp.pop %v657
        %v660 = vmul.f32 %v657, %v659
        %v661 = vsub.f32 1.0, %v660
        %v662 = vmul.f32 %v659, %v661
        %v663 = vadd.f32 %v659, %v662
        %vm664 = vweird.f32 %v657
        %vm665 = vweird.f32 %v659
        %vm666 = vmor %vm664, %vm665
        %v667 = vsel %vm666, %v659, %v663
        %v668 = vand.u32 2147483647, %v657
        %vm669 = vcmp.eq.f32.partialorder %v668, 8.507059e+37
        %v670 = vand.u32 %v657, 2147483648
        %v671 = vor.u32 1.1754944e-38, %v670
        %v672 = vsel %vm669, %v671, %v667
        %v673 = vmul.f32 %v658, %v672
        %v674 = vsub.f32 1.0, %v673
        %v675 = vsel %vm656, 0.0, %v674
        %676 = vrot.lane.b32.xlu0 %v652, 1
        %v677 = vpop.permute.xlu0 %676
        %678 = vrot.lane.b32.xlu0 %v653, 1
        %v679 = vpop.permute.xlu0 %678
        %vm680 = vcmp.lt.s32.totalorder %v599, 1
        %v681 = vsel %vm680, %v677, %v679
        %v682 = vsel %vm680, %v679, %v677
        %vm683 = vcmp.eq.s32.totalorder %v599, 0
        %vm684 = vcmp.eq.s32.totalorder %v600, 0
        %686 = vset.pattern.permute.xlu0 0
        %687 = vperm.xlu0 %686, %v675
        %v688 = vpop.permute.xlu0 %687
        %v690 = vsel %vm683, %v688, %v682
        %v691 = vsel %vm684, %v688, %v681
        %v692 = vsub.f32 %v652, %v690
        %v693 = vsub.f32 %v653, %v691
        %s694 = sld [smem:[#allocation3]]
        %v695 = vmax.f32 %v309, 0.0
        %v696 = vmax.f32 %v310, 0.0
        %v697 = vmul.f32 %v695, %v692
        %v698 = vmul.f32 %v696, %v693
        %v699 = vadd.f32 %v697, %v698
        %700 = vadd.xlane.f32.xlu0 %v699
        %v701 = vpop.xlane.xlu0 %700
        %v702 = vrot.slane %v701, 4
        %v703 = vadd.f32 %v701, %v702
        %v704 = vrot.slane %v703, 2
        %v705 = vadd.f32 %v703, %v704
        %v706 = vrot.slane %v705, 1
        %v707 = vadd.f32 %v705, %v706
        %s708 = vtos %v707
        %s709 = sadd.f32 %s694, %s708
        %s710 = scalar_lea.smem [#allocation3], 0
        %711 = sst [smem:[%s710]] %s709
        %vm712 = vcmask 7168
        %v713 = vsel %vm712, %v564, 0.0
        %714 = vadd.xlane.f32.xlu0 %v713
        %v715 = vpop.xlane.xlu0 %714
        %v716 = vrot.slane %v715, 4
        %v717 = vadd.f32 %v715, %v716
        %v718 = vrot.slane %v717, 2
        %v719 = vadd.f32 %v717, %v718
        %v720 = vrot.slane %v719, 1
        %v721 = vadd.f32 %v719, %v720
        %s722 = vtos %v721
        %s723 = sadd.f32 %s567, %s722
        %s724 = scalar_lea.smem [#allocation2], 0
        %725 = sst [smem:[%s724]] %s723
        // Predicated region
        $region49: #{_lovasz_forward.1} parent=39 // pred_check
          %p726 = pneg %p298
        $region50: #{_lovasz_forward.1} parent=39 // pred_check_branch
          %728 = sbr.rel (%p726) target = $region52
        $region51: #{_lovasz_forward.1} parent=39 // pred_region
          %s729 = sld [smem:[#allocation3]]
          %v730 = vstv %s729
          %v731 = vadd.f32 %v730, 0.0
          %732 = vst [vmem:[%s296] sm:$0xff] %v731
        $region52: #{_lovasz_forward.1} parent=39 // pred_fallthru
          _
        %p733 = scmp.lt.s32.totalorder %s21, 1
        %s734 = scalar_select %p733, %s21, 1
        %s735 = smul.addr %s734, 8
        %s736 = scalar_lea.vmem %s5, %s735
        // Predicated region
        $region53: #{_lovasz_forward.1} parent=39 // pred_check
          %p737 = pneg %p166
        $region54: #{_lovasz_forward.1} parent=39 // pred_check_branch
          %739 = sbr.rel (%p737) target = $region56
        $region55: #{_lovasz_forward.1} parent=39 // pred_region
          _
        $region56: #{_lovasz_forward.1} parent=39 // pred_fallthru
          _
      $region40: #{_lovasz_forward.1} parent=5 // pred_fallthru
        _
      %p740 = scmp.le.s32.totalorder 2, %s12
      // Predicated region
      $region57: #{_lovasz_forward.1} parent=5 // pred_check
        %p741 = pneg %p740
      $region58: #{_lovasz_forward.1} parent=5 // pred_check_branch
        %743 = sbr.rel (%p741) target = $region60
      $region59: #{_lovasz_forward.1} parent=5 // pred_region
        %s744 = ssub.s32 %s12, 2
        // Predicated region
        $region61: #{_lovasz_forward.1} parent=59 // pred_check
          %p745 = pneg %p172
        $region62: #{_lovasz_forward.1} parent=59 // pred_check_branch
          %747 = sbr.rel (%p745) target = $region64
        $region63: #{_lovasz_forward.1} parent=59 // pred_region
          %p748 = scmp.lt.s32.totalorder %s23, 1
          %s749 = scalar_select %p748, %s23, 1
          %s750 = smul.addr %s749, 8
          %s751 = scalar_lea.vmem %s5, %s750
        $region64: #{_lovasz_forward.1} parent=59 // pred_fallthru
          _
      $region60: #{_lovasz_forward.1} parent=5 // pred_fallthru
        _
    $region6: #{_lovasz_forward.1} parent=1 // loop_footer
      %s16 = sadd.s32 1, %s12
    $region7: #{_lovasz_forward.1} parent=1 // loop_footer_branch
      %11 = sbr.rel target = $region3
    $region8: #{_lovasz_forward.1} parent=1 // loop_exit
      _
    %752 = vsyncpa [#allocation5], 1
    %s753 = scalar_lea.sflag [#allocation5], 1
    %754 = vsyncpa %s753, 1

</llo_original>
